<compile_context>
chip_gen: v7x
topology: tpu7x:2x2x1
jax: 0.10.0
libtpu: 0.0.40
codegen_flags: <defaults>
</compile_context>

<pallas_src>
import math

import jax
import jax.numpy as jnp
from jax.experimental import pallas as pl
from jax.experimental.pallas import tpu as pltpu


def vn_linear_kernel(x_ref, w_ref, o_ref):
    # x_ref : (Bt, C_in,  TILE_M)   lane-dense activation tile
    # w_ref : (C_out, C_in)         resident weight (same block every step)
    # o_ref : (Bt, C_out, TILE_M)
    w = w_ref[...]
    for b in range(x_ref.shape[0]):          # Bt is a small static constant
        o_ref[b] = jnp.dot(
            w, x_ref[b], preferred_element_type=jnp.float32
        ).astype(o_ref.dtype)


def _round_up(x, m):
    return ((x + m - 1) // m) * m


def _vmem_capacity_bytes():
    try:
        return int(pltpu.get_tpu_info().vmem_capacity_bytes)
    except Exception:
        return 64 * 1024 * 1024            # conservative (v7x per-TC) fallback


def _plan_blocks(B, c_in, c_out, M, itemsize):
    """Pick (Bt, TILE_M) from a per-step byte target and a per-chip VMEM budget."""
    sub = 8 * (4 // itemsize)                       # sublane granularity (8 f32, 16 bf16)
    vmem_cap = _vmem_capacity_bytes()
    budget = min(vmem_cap // 2, 48 * 1024 * 1024)   # double-buffered tile budget
    target = int(1.5 * 1024 * 1024)                 # ~1.5 MiB of in+out HBM traffic / step

    hbm_per_lane = itemsize * (c_in + c_out)        # actual DMA bytes per lane per row
    vmem_per_lane = 2 * itemsize * (_round_up(c_in, sub) + _round_up(c_out, sub))

    if M < 128:
        tile_m = M                                   # block must equal the full array dim
    else:
        cap_target = max(128, (target // hbm_per_lane) // 128 * 128)
        cap_vmem = max(128, (budget // vmem_per_lane) // 128 * 128)
        tile_m = min(M - (M % 128) if M % 128 else M, cap_target, cap_vmem)

    n_m = -(-M // tile_m)                            # cdiv

    # Fold batch rows when a single tile already covers M but is still skinny.
    bt = 1
    if n_m == 1 and B > 1:
        step_bytes = hbm_per_lane * tile_m
        bt = max(1, min(B,
                        target // max(step_bytes, 1),
                        budget // max(vmem_per_lane * tile_m, 1)))
        # keep >= 2 parallel grid steps so both v7x TensorCores stay busy
        while bt > 1 and (-(-B // bt)) * n_m < 2:
            bt -= 1

    # explicit scoped-VMEM limit: actual working set + headroom, capped at chip VMEM
    vmem_need = bt * tile_m * vmem_per_lane \
        + 2 * 4 * _round_up(c_out, 8) * _round_up(c_in, 128)
    vmem_limit = int(min(vmem_cap, max(vmem_need + (8 << 20), 32 << 20)))
    return bt, tile_m, vmem_limit


def vn_linear(x, w_feat):
    """x: [B, C_in, 3, N, ...] (PyTorch layout).  Returns [B, C_out, 3, N, ...]."""
    B, c_in = x.shape[0], x.shape[1]
    rest = x.shape[2:]
    M = math.prod(rest)
    c_out = w_feat.shape[0]
    itemsize = jnp.dtype(x.dtype).itemsize

    xk = x.reshape(B, c_in, M)                       # free view reshape
    bt, tile_m, vmem_limit = _plan_blocks(B, c_in, c_out, M, itemsize)
    grid = (pl.cdiv(B, bt), pl.cdiv(M, tile_m))

    cost = pl.CostEstimate(
        flops=2 * B * M * c_in * c_out,
        transcendentals=0,
        bytes_accessed=(B * M * (c_in + c_out)) * itemsize
        + c_in * c_out * jnp.dtype(w_feat.dtype).itemsize,
    )

    out = pl.pallas_call(
        vn_linear_kernel,
        out_shape=jax.ShapeDtypeStruct((B, c_out, M), x.dtype),
        grid_spec=pltpu.PrefetchScalarGridSpec(
            num_scalar_prefetch=0,
            grid=grid,
            in_specs=[
                pl.BlockSpec((bt, c_in, tile_m), lambda b, m: (b, 0, m)),
                pl.BlockSpec((c_out, c_in), lambda b, m: (0, 0)),
            ],
            out_specs=pl.BlockSpec((bt, c_out, tile_m), lambda b, m: (b, 0, m)),
        ),
        compiler_params=pltpu.CompilerParams(
            dimension_semantics=("parallel", "parallel"),
            vmem_limit_bytes=vmem_limit,
        ),
        cost_estimate=cost,
    )(xk, w_feat)

    return out.reshape((B, c_out) + rest)


def _reference(x, w_feat):
    # Pure-JAX reference mirroring the PyTorch forward exactly.
    return jnp.einsum("oc,bcvn->bovn", w_feat, x)


if __name__ == "__main__":
    B, C_IN, C_OUT, N = 2, 4, 8, 1024
    key = jax.random.PRNGKey(0)
    kx, kw = jax.random.split(key)

    x = jax.random.normal(kx, (B, C_IN, 3, N), dtype=jnp.float32)

    # deterministic nn.Linear-style init (uniform +/- 1/sqrt(fan_in)), bias=False
    bound = 1.0 / math.sqrt(C_IN)
    w_feat = jax.random.uniform(kw, (C_OUT, C_IN), jnp.float32, -bound, bound)

    out = vn_linear(x, w_feat)
    out = jax.block_until_ready(out)

    ref = _reference(x, w_feat)
    assert out.shape == (B, C_OUT, 3, N)
    assert jnp.allclose(out, ref, atol=1e-5, rtol=1e-5)

    print("KERNEL_OK")
</pallas_src>

<mosaic_0001>
module attributes {stable_mosaic.version = 11 : i64} {
  func.func @vn_linear_kernel(%arg0: i32, %arg1: i32, %arg2: memref<1x4x3072xf32, #tpu.memory_space<vmem>>, %arg3: memref<8x4xf32, #tpu.memory_space<vmem>>, %arg4: memref<1x8x3072xf32, #tpu.memory_space<vmem>>) attributes {dimension_semantics = [#tpu.dimension_semantics<parallel>, #tpu.dimension_semantics<parallel>], iteration_bounds = array<i64: 2, 1>, scalar_prefetch = 0 : i64, scratch_operands = 0 : i64, tpu.core_type = #tpu.core_type<tc>, window_params = [{transform_indices = @transform_0, window_bounds = array<i64: 1, 4, 3072>}, {pipeline_mode = #tpu.pipeline_mode<synchronous>, transform_indices = @transform_1, window_bounds = array<i64: 8, 4>}, {transform_indices = @transform_2, window_bounds = array<i64: 1, 8, 3072>}]} {
    %c0 = arith.constant 0 : index
    %c0_0 = arith.constant 0 : index
    %0 = vector.load %arg3[%c0, %c0_0] : memref<8x4xf32, #tpu.memory_space<vmem>>, vector<8x4xf32>
    %c0_1 = arith.constant 0 : index
    %c0_2 = arith.constant 0 : index
    %c0_3 = arith.constant 0 : index
    %1 = vector.load %arg2[%c0_1, %c0_2, %c0_3] : memref<1x4x3072xf32, #tpu.memory_space<vmem>>, vector<1x4x3072xf32>
    %2 = vector.shape_cast %1 : vector<1x4x3072xf32> to vector<4x3072xf32>
    %cst = arith.constant dense<0.000000e+00> : vector<8x3072xf32>
    %3 = tpu.matmul %0, %2, %cst {dimension_numbers = #tpu.dot_dimension_numbers<[1], [0], [0], [1], [0, 0, 1, 1], [], []>} : vector<8x4xf32>, vector<4x3072xf32>, vector<8x3072xf32> -> vector<8x3072xf32>
    %c0_4 = arith.constant 0 : index
    %c0_5 = arith.constant 0 : index
    %c0_6 = arith.constant 0 : index
    %4 = vector.load %arg4[%c0_4, %c0_5, %c0_6] : memref<1x8x3072xf32, #tpu.memory_space<vmem>>, vector<1x8x3072xf32>
    %5 = vector.shape_cast %4 : vector<1x8x3072xf32> to vector<8x3072xf32>
    %6 = vector.shape_cast %3 : vector<8x3072xf32> to vector<1x8x3072xf32>
    tpu.vector_store %arg4[%c0_4, %c0_5, %c0_6], %6 {strides = array<i32>} : memref<1x8x3072xf32, #tpu.memory_space<vmem>>, vector<1x8x3072xf32>,
    return
  }
  func.func @transform_0(%arg0: i32, %arg1: i32) -> (i32, i32, i32) {
    %c0_i32 = arith.constant 0 : i32
    %c0_i32_0 = arith.constant 0 : i32
    return %arg0, %c0_i32, %arg1 : i32, i32, i32
  }
  func.func @transform_1(%arg0: i32, %arg1: i32) -> (i32, i32) {
    %c0_i32 = arith.constant 0 : i32
    %c0_i32_0 = arith.constant 0 : i32
    %c0_i32_1 = arith.constant 0 : i32
    return %c0_i32, %c0_i32_0 : i32, i32
  }
  func.func @transform_2(%arg0: i32, %arg1: i32) -> (i32, i32, i32) {
    %c0_i32 = arith.constant 0 : i32
    %c0_i32_0 = arith.constant 0 : i32
    return %arg0, %c0_i32, %arg1 : i32, i32, i32
  }
}

</mosaic_0001>

<llo_original>
// kernel: tpu_custom_call.1
$region0: #{tpu_custom_call.1}
  #allocation0 [shape = 'u32[]', space=smem, size = 0x4, offset = 0x4, fixed_abs, tag = 'smem constant byte address 0x4 - core index']
  #allocation1 [shape = 'u32[144,128]{1,0:T(1,128)}', space=vmem, size = 0x12000, scoped, tag = 'internal scratch']
  %s0 = inlined_call_operand.hbm [shape: f32[2,4,3072], index: 0, kind: input, shape index: {}]
  %s1 = inlined_call_operand.vmem [shape: f32[8,4], index: 1, kind: input, shape index: {}]
  %s2 = inlined_call_operand.hbm [shape: f32[2,8,3072], index: 2, kind: output, shape index: {}]
  %s3 = sld [smem:[#allocation0]]
  $region45: #{tpu_custom_call.1} parent=0
    _
  %s5 = ssub.s32 1, %s3
  %s6 = scalar_select 0, %s5, %s3
  $region1: #{tpu_custom_call.1} parent=0
    #allocation2 [shape = 'u8[98304]{0}', space=vmem, size = 0x18000, scoped, tag = 'input window, operand 0']
    #allocation3 [shape = 's32[2]{0}', space=sflag, size = 0x8, scoped, tag = 'scoped memory for tpu_custom_call.1']
    #allocation4 [shape = 's32[2]{0}', space=sflag, size = 0x8, scoped, tag = 'scoped memory for tpu_custom_call.1']
    #allocation5 [shape = 'u8[196608]{0}', space=vmem, size = 0x30000, scoped, tag = 'output window, operand 0']
    %7 = vsyncpa [#allocation3], 0
    %s8 = scalar_lea.sflag [#allocation3], 1
    %9 = vsyncpa %s8, 0
    %10 = vsyncpa [#allocation4], 0
    %s11 = scalar_lea.sflag [#allocation4], 1
    %12 = vsyncpa %s11, 0
    loop: start=0, step=1, limit=4
    $region2: #{tpu_custom_call.1} parent=1 // loop_pre_header
      _
    $region3: #{tpu_custom_call.1} parent=1 // loop_header
      %s14 = sphi 0, %s18
      %p15 = scmp.ge.s32.totalorder %s14, 4
      %s21 = sphi 0, %s33
      %s22 = sphi 0, %s29
      %s23 = sphi 0, %s21
      %s24 = sphi 0, %s22
      %s25 = sphi 0, %s23
      %s26 = sphi 0, %s24
      %s38 = sphi 0, %s40
      %s41 = sphi 0, %s38
      %s42 = sphi 0, %s41
      %s58 = sphi 0, %s42
      %s62 = sphi 0, %s62
      %s64 = sphi 0, %s62
      %s65 = sphi 0, %s64
      %s79 = sphi 0, %s65
      %s87 = sphi 0, %s89
      %s90 = sphi 0, %s87
      %s91 = sphi 0, %s90
      %s107 = sphi 0, %s91
    $region4: #{tpu_custom_call.1} parent=1 // loop_header_branch
      %17 = sbr.rel (%p15) target = $region8
    $region5: #{tpu_custom_call.1} parent=1 // loop_body
      %s19 = ssub.s32 %s14, 1
      %s20 = ssub.s32 %s14, 2
      %s27 = sadd.s32 1, %s22
      %p28 = scmp.ge.s32.totalorder %s27, 1
      %s29 = scalar_select %p28, 0, %s27
      %s30 = sadd.s32 1, %s21
      %s31 = scalar_select %p28, %s30, %s21
      %p32 = scmp.ge.s32.totalorder %s31, 2
      %s33 = scalar_select %p32, 0, %s31
      %s34 = ssub.s32 %s21, %s33
      %s35 = ssub.s32 %s22, %s29
      %s36 = sor.u32 %s34, %s35
      %p37 = scmp.eq.s32.totalorder %s36, 0
      %s39 = sadd.s32 %s38, 1
      %s40 = scalar_select %p37, %s38, %s39
      %p43 = pneg %p37
      %p44 = scmp.eq.s32.totalorder %s14, 1
      %p45 = por %p43, %p44
      %p46 = scmp.ne.s32.totalorder %s38, %s41
      %p47 = scmp.eq.s32.totalorder %s14, 0
      %p48 = por %p46, %p47
      %p49 = scmp.ne.s32.totalorder %s38, %s41
      %p50 = scmp.eq.s32.totalorder %s19, 1
      %p51 = por %p49, %p50
      %p52 = scmp.ne.s32.totalorder %s41, %s42
      %p53 = scmp.eq.s32.totalorder %s19, 0
      %p54 = por %p52, %p53
      %p55 = scmp.ne.s32.totalorder %s41, %s42
      %p56 = scmp.eq.s32.totalorder %s20, 1
      %p57 = por %p55, %p56
      %p59 = scmp.ne.s32.totalorder %s42, %s58
      %p60 = scmp.eq.s32.totalorder %s20, 0
      %p61 = por %p59, %p60
      %s63 = sadd.s32 %s62, 1
      %p66 = scmp.eq.s32.totalorder %s14, 1
      %p67 = scmp.ne.s32.totalorder %s62, %s64
      %p68 = scmp.eq.s32.totalorder %s14, 0
      %p69 = por %p67, %p68
      %p70 = scmp.ne.s32.totalorder %s62, %s64
      %p71 = scmp.eq.s32.totalorder %s19, 1
      %p72 = por %p70, %p71
      %p73 = scmp.ne.s32.totalorder %s64, %s65
      %p74 = scmp.eq.s32.totalorder %s19, 0
      %p75 = por %p73, %p74
      %p76 = scmp.ne.s32.totalorder %s64, %s65
      %p77 = scmp.eq.s32.totalorder %s20, 1
      %p78 = por %p76, %p77
      %p80 = scmp.ne.s32.totalorder %s65, %s79
      %p81 = scmp.eq.s32.totalorder %s20, 0
      %p82 = por %p80, %p81
      %s83 = ssub.s32 %s21, %s33
      %s84 = ssub.s32 %s22, %s29
      %s85 = sor.u32 %s83, %s84
      %p86 = scmp.eq.s32.totalorder %s85, 0
      %s88 = sadd.s32 %s87, 1
      %s89 = scalar_select %p86, %s87, %s88
      %p92 = pneg %p86
      %p93 = scmp.eq.s32.totalorder %s14, 1
      %p94 = por %p92, %p93
      %p95 = scmp.ne.s32.totalorder %s87, %s90
      %p96 = scmp.eq.s32.totalorder %s14, 0
      %p97 = por %p95, %p96
      %p98 = scmp.ne.s32.totalorder %s87, %s90
      %p99 = scmp.eq.s32.totalorder %s19, 1
      %p100 = por %p98, %p99
      %p101 = scmp.ne.s32.totalorder %s90, %s91
      %p102 = scmp.eq.s32.totalorder %s19, 0
      %p103 = por %p101, %p102
      %p104 = scmp.ne.s32.totalorder %s90, %s91
      %p105 = scmp.eq.s32.totalorder %s20, 1
      %p106 = por %p104, %p105
      %p108 = scmp.ne.s32.totalorder %s91, %s107
      %p109 = scmp.eq.s32.totalorder %s20, 0
      %p110 = por %p108, %p109
      %p111 = scmp.le.s32.totalorder 1, %s14
      %p112 = scmp.lt.s32.totalorder %s14, 3
      %p113 = pnand %p111, %p112
      %p114 = pneg %p113
      // Predicated region
      $region9: #{tpu_custom_call.1} parent=5 // pred_check
        _
      $region10: #{tpu_custom_call.1} parent=5 // pred_check_branch
        %116 = sbr.rel (%p113) target = $region12
      $region11: #{tpu_custom_call.1} parent=5 // pred_region
        %s117 = ssub.s32 %s14, 1
        // Predicated region
        $region13: #{tpu_custom_call.1} parent=11 // pred_check
          %p118 = pneg %p75
        $region14: #{tpu_custom_call.1} parent=11 // pred_check_branch
          %120 = sbr.rel (%p118) target = $region16
        $region15: #{tpu_custom_call.1} parent=11 // pred_region
          _
        $region16: #{tpu_custom_call.1} parent=11 // pred_fallthru
          _
      $region12: #{tpu_custom_call.1} parent=5 // pred_fallthru
        _
      %p121 = scmp.lt.s32.totalorder %s14, 2
      // Predicated region
      $region17: #{tpu_custom_call.1} parent=5 // pred_check
        %p122 = pneg %p121
      $region18: #{tpu_custom_call.1} parent=5 // pred_check_branch
        %124 = sbr.rel (%p122) target = $region20
      $region19: #{tpu_custom_call.1} parent=5 // pred_region
        // Predicated region
        $region21: #{tpu_custom_call.1} parent=19 // pred_check
          %p125 = pneg %p48
        $region22: #{tpu_custom_call.1} parent=19 // pred_check_branch
          %127 = sbr.rel (%p125) target = $region24
        $region23: #{tpu_custom_call.1} parent=19 // pred_region
          %s128 = sand.u32 %s38, 1
          %s129 = scalar_lea.sflag [#allocation3], %s128
          %s130 = sand.u32 %s38, 1
          %s131 = smul.addr %s130, 96
          %s132 = scalar_lea.vmem [#allocation2], %s131
          %s133 = smul.u32 24, %s22
          %s135 = ssub.s32 1536, 1536
          %136 = vsyncadd %s129, %s135
          %s137 = smul.addr %s21, 24
          %s138 = sadd.s32 %s133, %s137
          %s139 = smul.addr %s138, 64
          %s140 = scalar_lea.hbm %s0, %s139
          %s142 = sshll.u32 %s132, 4
          %s143 = int_to_ptr.vmem [resolvable:$true] %s142
          %145 = dma.hbm_to_vmem [thread:$0]  %s140, 1536, %s143, %s129
        $region24: #{tpu_custom_call.1} parent=19 // pred_fallthru
          _
      $region20: #{tpu_custom_call.1} parent=5 // pred_fallthru
        _
      %p146 = scmp.le.s32.totalorder 1, %s14
      %p147 = scmp.lt.s32.totalorder %s14, 3
      %p148 = pnand %p146, %p147
      %p149 = pneg %p148
      // Predicated region
      $region25: #{tpu_custom_call.1} parent=5 // pred_check
        _
      $region26: #{tpu_custom_call.1} parent=5 // pred_check_branch
        %151 = sbr.rel (%p148) target = $region28
      $region27: #{tpu_custom_call.1} parent=5 // pred_region
        %s152 = ssub.s32 %s14, 1
        %s153 = sand.u32 %s41, 1
        %s154 = scalar_lea.sflag [#allocation3], %s153
        %s155 = sand.u32 %s41, 1
        %s156 = smul.addr %s155, 96
        %s157 = scalar_lea.vmem [#allocation2], %s156
        // Predicated region
        $region29: #{tpu_custom_call.1} parent=27 // pred_check
          %p158 = pneg %p54
        $region30: #{tpu_custom_call.1} parent=27 // pred_check_branch
          %160 = sbr.rel (%p158) target = $region32
        $region31: #{tpu_custom_call.1} parent=27 // pred_region
          %161 = dma.done %s154, 1536
        $region32: #{tpu_custom_call.1} parent=27 // pred_fallthru
          _
        %s162 = sand.u32 %s41, 1
        %s163 = scalar_lea.sflag [#allocation3], %s162
        %s164 = sand.u32 %s41, 1
        %s165 = smul.addr %s164, 96
        %s166 = scalar_lea.vmem [#allocation2], %s165
        %p167 = pneg %p54
        %p168 = pneg %p51
        %p169 = pneg %p75
        %p170 = pneg %p72
        %p171 = pneg %p103
        %p172 = pneg %p100
        %s173 = sand.u32 %s90, 1
        %s174 = scalar_lea.sflag [#allocation4], %s173
        %s175 = sand.u32 %s90, 1
        %s176 = smul.addr %s175, 192
        %s177 = scalar_lea.vmem [#allocation5], %s176
        %s178 = smul.u32 24, %s24
        %s179 = smul.u32 24, %s24
        %v180 = vld [vmem:[%s1] sm:$0xff]
        %v181 = vld [vmem:[%s157] sm:$0xff]
        %v182 = vld [vmem:[%s157 + $0x8] sm:$0xff]
        %v183 = vld [vmem:[%s157 + $0x10] sm:$0xff]
        %v184 = vld [vmem:[%s157 + $0x18] sm:$0xff]
        %v185 = vld [vmem:[%s157 + $0x20] sm:$0xff]
        %v186 = vld [vmem:[%s157 + $0x28] sm:$0xff]
        %v187 = vld [vmem:[%s157 + $0x30] sm:$0xff]
        %v188 = vld [vmem:[%s157 + $0x38] sm:$0xff]
        %v189 = vld [vmem:[%s157 + $0x40] sm:$0xff]
        %v190 = vld [vmem:[%s157 + $0x48] sm:$0xff]
        %v191 = vld [vmem:[%s157 + $0x50] sm:$0xff]
        %v192 = vld [vmem:[%s157 + $0x58] sm:$0xff]
        %v205 = vcombine.high %v181, %v181
        %v206 = vcombine.high %v182, %v182
        %v207 = vcombine.high %v183, %v183
        %v208 = vcombine.high %v184, %v184
        %v209 = vcombine.high %v185, %v185
        %v210 = vcombine.high %v186, %v186
        %v211 = vcombine.high %v187, %v187
        %v212 = vcombine.high %v188, %v188
        %v213 = vcombine.high %v189, %v189
        %v214 = vcombine.high %v190, %v190
        %v215 = vcombine.high %v191, %v191
        %v216 = vcombine.high %v192, %v192
        %vm217 = vcmask 31744
        %v219 = vsel %vm217, %v180, 0
        %vm221 = vcmask 1043456
        %v222 = vsel %vm221, %v181, 0
        %v224 = vsel %vm221, %v205, 0
        %v226 = vsel %vm221, %v182, 0
        %v228 = vsel %vm221, %v206, 0
        %v230 = vsel %vm221, %v183, 0
        %v232 = vsel %vm221, %v207, 0
        %v234 = vsel %vm221, %v184, 0
        %v236 = vsel %vm221, %v208, 0
        %v238 = vsel %vm221, %v185, 0
        %v240 = vsel %vm221, %v209, 0
        %v242 = vsel %vm221, %v186, 0
        %v244 = vsel %vm221, %v210, 0
        %v246 = vsel %vm221, %v187, 0
        %v248 = vsel %vm221, %v211, 0
        %v250 = vsel %vm221, %v188, 0
        %v252 = vsel %vm221, %v212, 0
        %v254 = vsel %vm221, %v189, 0
        %v256 = vsel %vm221, %v213, 0
        %v258 = vsel %vm221, %v190, 0
        %v260 = vsel %vm221, %v214, 0
        %v262 = vsel %vm221, %v191, 0
        %v264 = vsel %vm221, %v215, 0
        %v266 = vsel %vm221, %v192, 0
        %v268 = vsel %vm221, %v216, 0
        %270 = vmatprep.subr.mxu0 %v224
        %271 = vmatpush1.msra.mxu0 %v222
        %272 = vmatprep.subr.mxu0 0.0
        %273 = vmatpush1.msra.mxu0 0.0
        %274 = vmatprep.subr.mxu0 0.0
        %275 = vmatpush1.msra.mxu0 0.0
        %276 = vmatprep.subr.mxu0 0.0
        %277 = vmatpush1.msra.mxu0 0.0
        %278 = vmatprep.subr.mxu0 0.0
        %279 = vmatpush1.msra.mxu0 0.0
        %280 = vmatprep.subr.mxu0 0.0
        %281 = vmatpush1.msra.mxu0 0.0
        %282 = vmatprep.subr.mxu0 0.0
        %283 = vmatpush1.msra.mxu0 0.0
        %284 = vmatprep.subr.mxu0 0.0
        %285 = vmatpush1.msra.mxu0 0.0
        %286 = vmatprep.subr.mxu0 0.0
        %287 = vmatpush1.msra.mxu0 0.0
        %288 = vmatprep.subr.mxu0 0.0
        %289 = vmatpush1.msra.mxu0 0.0
        %290 = vmatprep.subr.mxu0 0.0
        %291 = vmatpush1.msra.mxu0 0.0
        %292 = vmatprep.subr.mxu0 0.0
        %293 = vmatpush1.msra.mxu0 0.0
        %294 = vmatprep.subr.mxu0 0.0
        %295 = vmatpush1.msra.mxu0 0.0
        %296 = vmatprep.subr.mxu0 0.0
        %297 = vmatpush1.msra.mxu0 0.0
        %298 = vmatprep.subr.mxu0 0.0
        %299 = vmatpush1.msra.mxu0 0.0
        %300 = vmatprep.subr.mxu0 0.0
        %301 = vmatpush1.msra.mxu0 0.0
        %302 = vmatprep.subr.mxu0 0.0
        %303 = vmatpush1.msra.mxu0 0.0
        %304 = vmatprep.subr.mxu0 0.0
        %305 = vmatpush1.msra.mxu0 0.0
        %306 = vmatprep.subr.mxu0 0.0
        %307 = vmatpush1.msra.mxu0 0.0
        %308 = vmatprep.subr.mxu0 0.0
        %309 = vmatpush1.msra.mxu0 0.0
        %310 = vmatprep.subr.mxu0 0.0
        %311 = vmatpush1.msra.mxu0 0.0
        %312 = vmatprep.subr.mxu0 0.0
        %313 = vmatpush1.msra.mxu0 0.0
        %314 = vmatprep.subr.mxu0 0.0
        %315 = vmatpush1.msra.mxu0 0.0
        %316 = vmatprep.subr.mxu0 0.0
        %317 = vmatpush1.msra.mxu0 0.0
        %318 = vmatprep.subr.mxu0 0.0
        %319 = vmatpush1.msra.mxu0 0.0
        %320 = vmatprep.subr.mxu0 0.0
        %321 = vmatpush1.msra.mxu0 0.0
        %322 = vmatprep.subr.mxu0 0.0
        %323 = vmatpush1.msra.mxu0 0.0
        %324 = vmatprep.subr.mxu0 0.0
        %325 = vmatpush1.msra.mxu0 0.0
        %326 = vmatprep.subr.mxu0 0.0
        %327 = vmatpush1.msra.mxu0 0.0
        %328 = vmatprep.subr.mxu0 0.0
        %329 = vmatpush1.msra.mxu0 0.0
        %330 = vmatprep.subr.mxu0 0.0
        %331 = vmatpush1.msra.mxu0 0.0
        %332 = vmatprep.subr.mxu0 0.0
        %333 = vmatpush1.msra.mxu0 0.0
        %334 = vmatprep.mubr.f32.mxu0 0.0
        %335 = vmatmul.mubr.f32.gmra.mrb[0].mxu0 %v219
        %v336 = vpop.f32.mrb[0].mxu0
        %v337 = vadd.f32 0.0, %v336
        %v338 = vpop.f32.mrb[0].mxu0
        %v339 = vadd.f32 0.0, %v338
        %340 = vdwg.mxu0
        %341 = vmatprep.subr.mxu0 %v228
        %342 = vmatpush1.msra.mxu0 %v226
        %343 = vmatprep.subr.mxu0 0.0
        %344 = vmatpush1.msra.mxu0 0.0
        %345 = vmatprep.subr.mxu0 0.0
        %346 = vmatpush1.msra.mxu0 0.0
        %347 = vmatprep.subr.mxu0 0.0
        %348 = vmatpush1.msra.mxu0 0.0
        %349 = vmatprep.subr.mxu0 0.0
        %350 = vmatpush1.msra.mxu0 0.0
        %351 = vmatprep.subr.mxu0 0.0
        %352 = vmatpush1.msra.mxu0 0.0
        %353 = vmatprep.subr.mxu0 0.0
        %354 = vmatpush1.msra.mxu0 0.0
        %355 = vmatprep.subr.mxu0 0.0
        %356 = vmatpush1.msra.mxu0 0.0
        %357 = vmatprep.subr.mxu0 0.0
        %358 = vmatpush1.msra.mxu0 0.0
        %359 = vmatprep.subr.mxu0 0.0
        %360 = vmatpush1.msra.mxu0 0.0
        %361 = vmatprep.subr.mxu0 0.0
        %362 = vmatpush1.msra.mxu0 0.0
        %363 = vmatprep.subr.mxu0 0.0
        %364 = vmatpush1.msra.mxu0 0.0
        %365 = vmatprep.subr.mxu0 0.0
        %366 = vmatpush1.msra.mxu0 0.0
        %367 = vmatprep.subr.mxu0 0.0
        %368 = vmatpush1.msra.mxu0 0.0
        %369 = vmatprep.subr.mxu0 0.0
        %370 = vmatpush1.msra.mxu0 0.0
        %371 = vmatprep.subr.mxu0 0.0
        %372 = vmatpush1.msra.mxu0 0.0
        %373 = vmatprep.subr.mxu0 0.0
        %374 = vmatpush1.msra.mxu0 0.0
        %375 = vmatprep.subr.mxu0 0.0
        %376 = vmatpush1.msra.mxu0 0.0
        %377 = vmatprep.subr.mxu0 0.0
        %378 = vmatpush1.msra.mxu0 0.0
        %379 = vmatprep.subr.mxu0 0.0
        %380 = vmatpush1.msra.mxu0 0.0
        %381 = vmatprep.subr.mxu0 0.0
        %382 = vmatpush1.msra.mxu0 0.0
        %383 = vmatprep.subr.mxu0 0.0
        %384 = vmatpush1.msra.mxu0 0.0
        %385 = vmatprep.subr.mxu0 0.0
        %386 = vmatpush1.msra.mxu0 0.0
        %387 = vmatprep.subr.mxu0 0.0
        %388 = vmatpush1.msra.mxu0 0.0
        %389 = vmatprep.subr.mxu0 0.0
        %390 = vmatpush1.msra.mxu0 0.0
        %391 = vmatprep.subr.mxu0 0.0
        %392 = vmatpush1.msra.mxu0 0.0
        %393 = vmatprep.subr.mxu0 0.0
        %394 = vmatpush1.msra.mxu0 0.0
        %395 = vmatprep.subr.mxu0 0.0
        %396 = vmatpush1.msra.mxu0 0.0
        %397 = vmatprep.subr.mxu0 0.0
        %398 = vmatpush1.msra.mxu0 0.0
        %399 = vmatprep.subr.mxu0 0.0
        %400 = vmatpush1.msra.mxu0 0.0
        %401 = vmatprep.subr.mxu0 0.0
        %402 = vmatpush1.msra.mxu0 0.0
        %403 = vmatprep.subr.mxu0 0.0
        %404 = vmatpush1.msra.mxu0 0.0
        %405 = vmatprep.mubr.f32.mxu0 0.0
        %406 = vmatmul.mubr.f32.gmra.mrb[0].mxu0 %v219
        %v407 = vpop.f32.mrb[0].mxu0
        %v408 = vadd.f32 0.0, %v407
        %v409 = vpop.f32.mrb[0].mxu0
        %v410 = vadd.f32 0.0, %v409
        %411 = vdwg.mxu0
        %412 = vmatprep.subr.mxu0 %v232
        %413 = vmatpush1.msra.mxu0 %v230
        %414 = vmatprep.subr.mxu0 0.0
        %415 = vmatpush1.msra.mxu0 0.0
        %416 = vmatprep.subr.mxu0 0.0
        %417 = vmatpush1.msra.mxu0 0.0
        %418 = vmatprep.subr.mxu0 0.0
        %419 = vmatpush1.msra.mxu0 0.0
        %420 = vmatprep.subr.mxu0 0.0
        %421 = vmatpush1.msra.mxu0 0.0
        %422 = vmatprep.subr.mxu0 0.0
        %423 = vmatpush1.msra.mxu0 0.0
        %424 = vmatprep.subr.mxu0 0.0
        %425 = vmatpush1.msra.mxu0 0.0
        %426 = vmatprep.subr.mxu0 0.0
        %427 = vmatpush1.msra.mxu0 0.0
        %428 = vmatprep.subr.mxu0 0.0
        %429 = vmatpush1.msra.mxu0 0.0
        %430 = vmatprep.subr.mxu0 0.0
        %431 = vmatpush1.msra.mxu0 0.0
        %432 = vmatprep.subr.mxu0 0.0
        %433 = vmatpush1.msra.mxu0 0.0
        %434 = vmatprep.subr.mxu0 0.0
        %435 = vmatpush1.msra.mxu0 0.0
        %436 = vmatprep.subr.mxu0 0.0
        %437 = vmatpush1.msra.mxu0 0.0
        %438 = vmatprep.subr.mxu0 0.0
        %439 = vmatpush1.msra.mxu0 0.0
        %440 = vmatprep.subr.mxu0 0.0
        %441 = vmatpush1.msra.mxu0 0.0
        %442 = vmatprep.subr.mxu0 0.0
        %443 = vmatpush1.msra.mxu0 0.0
        %444 = vmatprep.subr.mxu0 0.0
        %445 = vmatpush1.msra.mxu0 0.0
        %446 = vmatprep.subr.mxu0 0.0
        %447 = vmatpush1.msra.mxu0 0.0
        %448 = vmatprep.subr.mxu0 0.0
        %449 = vmatpush1.msra.mxu0 0.0
        %450 = vmatprep.subr.mxu0 0.0
        %451 = vmatpush1.msra.mxu0 0.0
        %452 = vmatprep.subr.mxu0 0.0
        %453 = vmatpush1.msra.mxu0 0.0
        %454 = vmatprep.subr.mxu0 0.0
        %455 = vmatpush1.msra.mxu0 0.0
        %456 = vmatprep.subr.mxu0 0.0
        %457 = vmatpush1.msra.mxu0 0.0
        %458 = vmatprep.subr.mxu0 0.0
        %459 = vmatpush1.msra.mxu0 0.0
        %460 = vmatprep.subr.mxu0 0.0
        %461 = vmatpush1.msra.mxu0 0.0
        %462 = vmatprep.subr.mxu0 0.0
        %463 = vmatpush1.msra.mxu0 0.0
        %464 = vmatprep.subr.mxu0 0.0
        %465 = vmatpush1.msra.mxu0 0.0
        %466 = vmatprep.subr.mxu0 0.0
        %467 = vmatpush1.msra.mxu0 0.0
        %468 = vmatprep.subr.mxu0 0.0
        %469 = vmatpush1.msra.mxu0 0.0
        %470 = vmatprep.subr.mxu0 0.0
        %471 = vmatpush1.msra.mxu0 0.0
        %472 = vmatprep.subr.mxu0 0.0
        %473 = vmatpush1.msra.mxu0 0.0
        %474 = vmatprep.subr.mxu0 0.0
        %475 = vmatpush1.msra.mxu0 0.0
        %476 = vmatprep.mubr.f32.mxu0 0.0
        %477 = vmatmul.mubr.f32.gmra.mrb[0].mxu0 %v219
        %v478 = vpop.f32.mrb[0].mxu0
        %v479 = vadd.f32 0.0, %v478
        %v480 = vpop.f32.mrb[0].mxu0
        %v481 = vadd.f32 0.0, %v480
        %482 = vdwg.mxu0
        %483 = vmatprep.subr.mxu0 %v236
        %484 = vmatpush1.msra.mxu0 %v234
        %485 = vmatprep.subr.mxu0 0.0
        %486 = vmatpush1.msra.mxu0 0.0
        %487 = vmatprep.subr.mxu0 0.0
        %488 = vmatpush1.msra.mxu0 0.0
        %489 = vmatprep.subr.mxu0 0.0
        %490 = vmatpush1.msra.mxu0 0.0
        %491 = vmatprep.subr.mxu0 0.0
        %492 = vmatpush1.msra.mxu0 0.0
        %493 = vmatprep.subr.mxu0 0.0
        %494 = vmatpush1.msra.mxu0 0.0
        %495 = vmatprep.subr.mxu0 0.0
        %496 = vmatpush1.msra.mxu0 0.0
        %497 = vmatprep.subr.mxu0 0.0
        %498 = vmatpush1.msra.mxu0 0.0
        %499 = vmatprep.subr.mxu0 0.0
        %500 = vmatpush1.msra.mxu0 0.0
        %501 = vmatprep.subr.mxu0 0.0
        %502 = vmatpush1.msra.mxu0 0.0
        %503 = vmatprep.subr.mxu0 0.0
        %504 = vmatpush1.msra.mxu0 0.0
        %505 = vmatprep.subr.mxu0 0.0
        %506 = vmatpush1.msra.mxu0 0.0
        %507 = vmatprep.subr.mxu0 0.0
        %508 = vmatpush1.msra.mxu0 0.0
        %509 = vmatprep.subr.mxu0 0.0
        %510 = vmatpush1.msra.mxu0 0.0
        %511 = vmatprep.subr.mxu0 0.0
        %512 = vmatpush1.msra.mxu0 0.0
        %513 = vmatprep.subr.mxu0 0.0
        %514 = vmatpush1.msra.mxu0 0.0
        %515 = vmatprep.subr.mxu0 0.0
        %516 = vmatpush1.msra.mxu0 0.0
        %517 = vmatprep.subr.mxu0 0.0
        %518 = vmatpush1.msra.mxu0 0.0
        %519 = vmatprep.subr.mxu0 0.0
        %520 = vmatpush1.msra.mxu0 0.0
        %521 = vmatprep.subr.mxu0 0.0
        %522 = vmatpush1.msra.mxu0 0.0
        %523 = vmatprep.subr.mxu0 0.0
        %524 = vmatpush1.msra.mxu0 0.0
        %525 = vmatprep.subr.mxu0 0.0
        %526 = vmatpush1.msra.mxu0 0.0
        %527 = vmatprep.subr.mxu0 0.0
        %528 = vmatpush1.msra.mxu0 0.0
        %529 = vmatprep.subr.mxu0 0.0
        %530 = vmatpush1.msra.mxu0 0.0
        %531 = vmatprep.subr.mxu0 0.0
        %532 = vmatpush1.msra.mxu0 0.0
        %533 = vmatprep.subr.mxu0 0.0
        %534 = vmatpush1.msra.mxu0 0.0
        %535 = vmatprep.subr.mxu0 0.0
        %536 = vmatpush1.msra.mxu0 0.0
        %537 = vmatprep.subr.mxu0 0.0
        %538 = vmatpush1.msra.mxu0 0.0
        %539 = vmatprep.subr.mxu0 0.0
        %540 = vmatpush1.msra.mxu0 0.0
        %541 = vmatprep.subr.mxu0 0.0
        %542 = vmatpush1.msra.mxu0 0.0
        %543 = vmatprep.subr.mxu0 0.0
        %544 = vmatpush1.msra.mxu0 0.0
        %545 = vmatprep.subr.mxu0 0.0
        %546 = vmatpush1.msra.mxu0 0.0
        %547 = vmatprep.mubr.f32.mxu0 0.0
        %548 = vmatmul.mubr.f32.gmra.mrb[0].mxu0 %v219
        %v549 = vpop.f32.mrb[0].mxu0
        %v550 = vadd.f32 0.0, %v549
        %v551 = vpop.f32.mrb[0].mxu0
        %v552 = vadd.f32 0.0, %v551
        %553 = vdwg.mxu0
        %554 = vmatprep.subr.mxu0 %v240
        %555 = vmatpush1.msra.mxu0 %v238
        %556 = vmatprep.subr.mxu0 0.0
        %557 = vmatpush1.msra.mxu0 0.0
        %558 = vmatprep.subr.mxu0 0.0
        %559 = vmatpush1.msra.mxu0 0.0
        %560 = vmatprep.subr.mxu0 0.0
        %561 = vmatpush1.msra.mxu0 0.0
        %562 = vmatprep.subr.mxu0 0.0
        %563 = vmatpush1.msra.mxu0 0.0
        %564 = vmatprep.subr.mxu0 0.0
        %565 = vmatpush1.msra.mxu0 0.0
        %566 = vmatprep.subr.mxu0 0.0
        %567 = vmatpush1.msra.mxu0 0.0
        %568 = vmatprep.subr.mxu0 0.0
        %569 = vmatpush1.msra.mxu0 0.0
        %570 = vmatprep.subr.mxu0 0.0
        %571 = vmatpush1.msra.mxu0 0.0
        %572 = vmatprep.subr.mxu0 0.0
        %573 = vmatpush1.msra.mxu0 0.0
        %574 = vmatprep.subr.mxu0 0.0
        %575 = vmatpush1.msra.mxu0 0.0
        %576 = vmatprep.subr.mxu0 0.0
        %577 = vmatpush1.msra.mxu0 0.0
        %578 = vmatprep.subr.mxu0 0.0
        %579 = vmatpush1.msra.mxu0 0.0
        %580 = vmatprep.subr.mxu0 0.0
        %581 = vmatpush1.msra.mxu0 0.0
        %582 = vmatprep.subr.mxu0 0.0
        %583 = vmatpush1.msra.mxu0 0.0
        %584 = vmatprep.subr.mxu0 0.0
        %585 = vmatpush1.msra.mxu0 0.0
        %586 = vmatprep.subr.mxu0 0.0
        %587 = vmatpush1.msra.mxu0 0.0
        %588 = vmatprep.subr.mxu0 0.0
        %589 = vmatpush1.msra.mxu0 0.0
        %590 = vmatprep.subr.mxu0 0.0
        %591 = vmatpush1.msra.mxu0 0.0
        %592 = vmatprep.subr.mxu0 0.0
        %593 = vmatpush1.msra.mxu0 0.0
        %594 = vmatprep.subr.mxu0 0.0
        %595 = vmatpush1.msra.mxu0 0.0
        %596 = vmatprep.subr.mxu0 0.0
        %597 = vmatpush1.msra.mxu0 0.0
        %598 = vmatprep.subr.mxu0 0.0
        %599 = vmatpush1.msra.mxu0 0.0
        %600 = vmatprep.subr.mxu0 0.0
        %601 = vmatpush1.msra.mxu0 0.0
        %602 = vmatprep.subr.mxu0 0.0
        %603 = vmatpush1.msra.mxu0 0.0
        %604 = vmatprep.subr.mxu0 0.0
        %605 = vmatpush1.msra.mxu0 0.0
        %606 = vmatprep.subr.mxu0 0.0
        %607 = vmatpush1.msra.mxu0 0.0
        %608 = vmatprep.subr.mxu0 0.0
        %609 = vmatpush1.msra.mxu0 0.0
        %610 = vmatprep.subr.mxu0 0.0
        %611 = vmatpush1.msra.mxu0 0.0
        %612 = vmatprep.subr.mxu0 0.0
        %613 = vmatpush1.msra.mxu0 0.0
        %614 = vmatprep.subr.mxu0 0.0
        %615 = vmatpush1.msra.mxu0 0.0
        %616 = vmatprep.subr.mxu0 0.0
        %617 = vmatpush1.msra.mxu0 0.0
        %618 = vmatprep.mubr.f32.mxu0 0.0
        %619 = vmatmul.mubr.f32.gmra.mrb[0].mxu0 %v219
        %v620 = vpop.f32.mrb[0].mxu0
        %v621 = vadd.f32 0.0, %v620
        %v622 = vpop.f32.mrb[0].mxu0
        %v623 = vadd.f32 0.0, %v622
        %624 = vdwg.mxu0
        %625 = vmatprep.subr.mxu0 %v244
        %626 = vmatpush1.msra.mxu0 %v242
        %627 = vmatprep.subr.mxu0 0.0
        %628 = vmatpush1.msra.mxu0 0.0
        %629 = vmatprep.subr.mxu0 0.0
        %630 = vmatpush1.msra.mxu0 0.0
        %631 = vmatprep.subr.mxu0 0.0
        %632 = vmatpush1.msra.mxu0 0.0
        %633 = vmatprep.subr.mxu0 0.0
        %634 = vmatpush1.msra.mxu0 0.0
        %635 = vmatprep.subr.mxu0 0.0
        %636 = vmatpush1.msra.mxu0 0.0
        %637 = vmatprep.subr.mxu0 0.0
        %638 = vmatpush1.msra.mxu0 0.0
        %639 = vmatprep.subr.mxu0 0.0
        %640 = vmatpush1.msra.mxu0 0.0
        %641 = vmatprep.subr.mxu0 0.0
        %642 = vmatpush1.msra.mxu0 0.0
        %643 = vmatprep.subr.mxu0 0.0
        %644 = vmatpush1.msra.mxu0 0.0
        %645 = vmatprep.subr.mxu0 0.0
        %646 = vmatpush1.msra.mxu0 0.0
        %647 = vmatprep.subr.mxu0 0.0
        %648 = vmatpush1.msra.mxu0 0.0
        %649 = vmatprep.subr.mxu0 0.0
        %650 = vmatpush1.msra.mxu0 0.0
        %651 = vmatprep.subr.mxu0 0.0
        %652 = vmatpush1.msra.mxu0 0.0
        %653 = vmatprep.subr.mxu0 0.0
        %654 = vmatpush1.msra.mxu0 0.0
        %655 = vmatprep.subr.mxu0 0.0
        %656 = vmatpush1.msra.mxu0 0.0
        %657 = vmatprep.subr.mxu0 0.0
        %658 = vmatpush1.msra.mxu0 0.0
        %659 = vmatprep.subr.mxu0 0.0
        %660 = vmatpush1.msra.mxu0 0.0
        %661 = vmatprep.subr.mxu0 0.0
        %662 = vmatpush1.msra.mxu0 0.0
        %663 = vmatprep.subr.mxu0 0.0
        %664 = vmatpush1.msra.mxu0 0.0
        %665 = vmatprep.subr.mxu0 0.0
        %666 = vmatpush1.msra.mxu0 0.0
        %667 = vmatprep.subr.mxu0 0.0
        %668 = vmatpush1.msra.mxu0 0.0
        %669 = vmatprep.subr.mxu0 0.0
        %670 = vmatpush1.msra.mxu0 0.0
        %671 = vmatprep.subr.mxu0 0.0
        %672 = vmatpush1.msra.mxu0 0.0
        %673 = vmatprep.subr.mxu0 0.0
        %674 = vmatpush1.msra.mxu0 0.0
        %675 = vmatprep.subr.mxu0 0.0
        %676 = vmatpush1.msra.mxu0 0.0
        %677 = vmatprep.subr.mxu0 0.0
        %678 = vmatpush1.msra.mxu0 0.0
        %679 = vmatprep.subr.mxu0 0.0
        %680 = vmatpush1.msra.mxu0 0.0
        %681 = vmatprep.subr.mxu0 0.0
        %682 = vmatpush1.msra.mxu0 0.0
        %683 = vmatprep.subr.mxu0 0.0
        %684 = vmatpush1.msra.mxu0 0.0
        %685 = vmatprep.subr.mxu0 0.0
        %686 = vmatpush1.msra.mxu0 0.0
        %687 = vmatprep.subr.mxu0 0.0
        %688 = vmatpush1.msra.mxu0 0.0
        %689 = vmatprep.mubr.f32.mxu0 0.0
        %690 = vmatmul.mubr.f32.gmra.mrb[0].mxu0 %v219
        %v691 = vpop.f32.mrb[0].mxu0
        %v692 = vadd.f32 0.0, %v691
        %v693 = vpop.f32.mrb[0].mxu0
        %v694 = vadd.f32 0.0, %v693
        %695 = vdwg.mxu0
        %696 = vmatprep.subr.mxu0 %v248
        %697 = vmatpush1.msra.mxu0 %v246
        %698 = vmatprep.subr.mxu0 0.0
        %699 = vmatpush1.msra.mxu0 0.0
        %700 = vmatprep.subr.mxu0 0.0
        %701 = vmatpush1.msra.mxu0 0.0
        %702 = vmatprep.subr.mxu0 0.0
        %703 = vmatpush1.msra.mxu0 0.0
        %704 = vmatprep.subr.mxu0 0.0
        %705 = vmatpush1.msra.mxu0 0.0
        %706 = vmatprep.subr.mxu0 0.0
        %707 = vmatpush1.msra.mxu0 0.0
        %708 = vmatprep.subr.mxu0 0.0
        %709 = vmatpush1.msra.mxu0 0.0
        %710 = vmatprep.subr.mxu0 0.0
        %711 = vmatpush1.msra.mxu0 0.0
        %712 = vmatprep.subr.mxu0 0.0
        %713 = vmatpush1.msra.mxu0 0.0
        %714 = vmatprep.subr.mxu0 0.0
        %715 = vmatpush1.msra.mxu0 0.0
        %716 = vmatprep.subr.mxu0 0.0
        %717 = vmatpush1.msra.mxu0 0.0
        %718 = vmatprep.subr.mxu0 0.0
        %719 = vmatpush1.msra.mxu0 0.0
        %720 = vmatprep.subr.mxu0 0.0
        %721 = vmatpush1.msra.mxu0 0.0
        %722 = vmatprep.subr.mxu0 0.0
        %723 = vmatpush1.msra.mxu0 0.0
        %724 = vmatprep.subr.mxu0 0.0
        %725 = vmatpush1.msra.mxu0 0.0
        %726 = vmatprep.subr.mxu0 0.0
        %727 = vmatpush1.msra.mxu0 0.0
        %728 = vmatprep.subr.mxu0 0.0
        %729 = vmatpush1.msra.mxu0 0.0
        %730 = vmatprep.subr.mxu0 0.0
        %731 = vmatpush1.msra.mxu0 0.0
        %732 = vmatprep.subr.mxu0 0.0
        %733 = vmatpush1.msra.mxu0 0.0
        %734 = vmatprep.subr.mxu0 0.0
        %735 = vmatpush1.msra.mxu0 0.0
        %736 = vmatprep.subr.mxu0 0.0
        %737 = vmatpush1.msra.mxu0 0.0
        %738 = vmatprep.subr.mxu0 0.0
        %739 = vmatpush1.msra.mxu0 0.0
        %740 = vmatprep.subr.mxu0 0.0
        %741 = vmatpush1.msra.mxu0 0.0
        %742 = vmatprep.subr.mxu0 0.0
        %743 = vmatpush1.msra.mxu0 0.0
        %744 = vmatprep.subr.mxu0 0.0
        %745 = vmatpush1.msra.mxu0 0.0
        %746 = vmatprep.subr.mxu0 0.0
        %747 = vmatpush1.msra.mxu0 0.0
        %748 = vmatprep.subr.mxu0 0.0
        %749 = vmatpush1.msra.mxu0 0.0
        %750 = vmatprep.subr.mxu0 0.0
        %751 = vmatpush1.msra.mxu0 0.0
        %752 = vmatprep.subr.mxu0 0.0
        %753 = vmatpush1.msra.mxu0 0.0
        %754 = vmatprep.subr.mxu0 0.0
        %755 = vmatpush1.msra.mxu0 0.0
        %756 = vmatprep.subr.mxu0 0.0
        %757 = vmatpush1.msra.mxu0 0.0
        %758 = vmatprep.subr.mxu0 0.0
        %759 = vmatpush1.msra.mxu0 0.0
        %760 = vmatprep.mubr.f32.mxu0 0.0
        %761 = vmatmul.mubr.f32.gmra.mrb[0].mxu0 %v219
        %v762 = vpop.f32.mrb[0].mxu0
        %v763 = vadd.f32 0.0, %v762
        %v764 = vpop.f32.mrb[0].mxu0
        %v765 = vadd.f32 0.0, %v764
        %766 = vdwg.mxu0
        %767 = vmatprep.subr.mxu0 %v252
        %768 = vmatpush1.msra.mxu0 %v250
        %769 = vmatprep.subr.mxu0 0.0
        %770 = vmatpush1.msra.mxu0 0.0
        %771 = vmatprep.subr.mxu0 0.0
        %772 = vmatpush1.msra.mxu0 0.0
        %773 = vmatprep.subr.mxu0 0.0
        %774 = vmatpush1.msra.mxu0 0.0
        %775 = vmatprep.subr.mxu0 0.0
        %776 = vmatpush1.msra.mxu0 0.0
        %777 = vmatprep.subr.mxu0 0.0
        %778 = vmatpush1.msra.mxu0 0.0
        %779 = vmatprep.subr.mxu0 0.0
        %780 = vmatpush1.msra.mxu0 0.0
        %781 = vmatprep.subr.mxu0 0.0
        %782 = vmatpush1.msra.mxu0 0.0
        %783 = vmatprep.subr.mxu0 0.0
        %784 = vmatpush1.msra.mxu0 0.0
        %785 = vmatprep.subr.mxu0 0.0
        %786 = vmatpush1.msra.mxu0 0.0
        %787 = vmatprep.subr.mxu0 0.0
        %788 = vmatpush1.msra.mxu0 0.0
        %789 = vmatprep.subr.mxu0 0.0
        %790 = vmatpush1.msra.mxu0 0.0
        %791 = vmatprep.subr.mxu0 0.0
        %792 = vmatpush1.msra.mxu0 0.0
        %793 = vmatprep.subr.mxu0 0.0
        %794 = vmatpush1.msra.mxu0 0.0
        %795 = vmatprep.subr.mxu0 0.0
        %796 = vmatpush1.msra.mxu0 0.0
        %797 = vmatprep.subr.mxu0 0.0
        %798 = vmatpush1.msra.mxu0 0.0
        %799 = vmatprep.subr.mxu0 0.0
        %800 = vmatpush1.msra.mxu0 0.0
        %801 = vmatprep.subr.mxu0 0.0
        %802 = vmatpush1.msra.mxu0 0.0
        %803 = vmatprep.subr.mxu0 0.0
        %804 = vmatpush1.msra.mxu0 0.0
        %805 = vmatprep.subr.mxu0 0.0
        %806 = vmatpush1.msra.mxu0 0.0
        %807 = vmatprep.subr.mxu0 0.0
        %808 = vmatpush1.msra.mxu0 0.0
        %809 = vmatprep.subr.mxu0 0.0
        %810 = vmatpush1.msra.mxu0 0.0
        %811 = vmatprep.subr.mxu0 0.0
        %812 = vmatpush1.msra.mxu0 0.0
        %813 = vmatprep.subr.mxu0 0.0
        %814 = vmatpush1.msra.mxu0 0.0
        %815 = vmatprep.subr.mxu0 0.0
        %816 = vmatpush1.msra.mxu0 0.0
        %817 = vmatprep.subr.mxu0 0.0
        %818 = vmatpush1.msra.mxu0 0.0
        %819 = vmatprep.subr.mxu0 0.0
        %820 = vmatpush1.msra.mxu0 0.0
        %821 = vmatprep.subr.mxu0 0.0
        %822 = vmatpush1.msra.mxu0 0.0
        %823 = vmatprep.subr.mxu0 0.0
        %824 = vmatpush1.msra.mxu0 0.0
        %825 = vmatprep.subr.mxu0 0.0
        %826 = vmatpush1.msra.mxu0 0.0
        %827 = vmatprep.subr.mxu0 0.0
        %828 = vmatpush1.msra.mxu0 0.0
        %829 = vmatprep.subr.mxu0 0.0
        %830 = vmatpush1.msra.mxu0 0.0
        %831 = vmatprep.mubr.f32.mxu0 0.0
        %832 = vmatmul.mubr.f32.gmra.mrb[0].mxu0 %v219
        %v833 = vpop.f32.mrb[0].mxu0
        %v834 = vadd.f32 0.0, %v833
        %v835 = vpop.f32.mrb[0].mxu0
        %v836 = vadd.f32 0.0, %v835
        %837 = vdwg.mxu0
        %838 = vmatprep.subr.mxu0 %v256
        %839 = vmatpush1.msra.mxu0 %v254
        %840 = vmatprep.subr.mxu0 0.0
        %841 = vmatpush1.msra.mxu0 0.0
        %842 = vmatprep.subr.mxu0 0.0
        %843 = vmatpush1.msra.mxu0 0.0
        %844 = vmatprep.subr.mxu0 0.0
        %845 = vmatpush1.msra.mxu0 0.0
        %846 = vmatprep.subr.mxu0 0.0
        %847 = vmatpush1.msra.mxu0 0.0
        %848 = vmatprep.subr.mxu0 0.0
        %849 = vmatpush1.msra.mxu0 0.0
        %850 = vmatprep.subr.mxu0 0.0
        %851 = vmatpush1.msra.mxu0 0.0
        %852 = vmatprep.subr.mxu0 0.0
        %853 = vmatpush1.msra.mxu0 0.0
        %854 = vmatprep.subr.mxu0 0.0
        %855 = vmatpush1.msra.mxu0 0.0
        %856 = vmatprep.subr.mxu0 0.0
        %857 = vmatpush1.msra.mxu0 0.0
        %858 = vmatprep.subr.mxu0 0.0
        %859 = vmatpush1.msra.mxu0 0.0
        %860 = vmatprep.subr.mxu0 0.0
        %861 = vmatpush1.msra.mxu0 0.0
        %862 = vmatprep.subr.mxu0 0.0
        %863 = vmatpush1.msra.mxu0 0.0
        %864 = vmatprep.subr.mxu0 0.0
        %865 = vmatpush1.msra.mxu0 0.0
        %866 = vmatprep.subr.mxu0 0.0
        %867 = vmatpush1.msra.mxu0 0.0
        %868 = vmatprep.subr.mxu0 0.0
        %869 = vmatpush1.msra.mxu0 0.0
        %870 = vmatprep.subr.mxu0 0.0
        %871 = vmatpush1.msra.mxu0 0.0
        %872 = vmatprep.subr.mxu0 0.0
        %873 = vmatpush1.msra.mxu0 0.0
        %874 = vmatprep.subr.mxu0 0.0
        %875 = vmatpush1.msra.mxu0 0.0
        %876 = vmatprep.subr.mxu0 0.0
        %877 = vmatpush1.msra.mxu0 0.0
        %878 = vmatprep.subr.mxu0 0.0
        %879 = vmatpush1.msra.mxu0 0.0
        %880 = vmatprep.subr.mxu0 0.0
        %881 = vmatpush1.msra.mxu0 0.0
        %882 = vmatprep.subr.mxu0 0.0
        %883 = vmatpush1.msra.mxu0 0.0
        %884 = vmatprep.subr.mxu0 0.0
        %885 = vmatpush1.msra.mxu0 0.0
        %886 = vmatprep.subr.mxu0 0.0
        %887 = vmatpush1.msra.mxu0 0.0
        %888 = vmatprep.subr.mxu0 0.0
        %889 = vmatpush1.msra.mxu0 0.0
        %890 = vmatprep.subr.mxu0 0.0
        %891 = vmatpush1.msra.mxu0 0.0
        %892 = vmatprep.subr.mxu0 0.0
        %893 = vmatpush1.msra.mxu0 0.0
        %894 = vmatprep.subr.mxu0 0.0
        %895 = vmatpush1.msra.mxu0 0.0
        %896 = vmatprep.subr.mxu0 0.0
        %897 = vmatpush1.msra.mxu0 0.0
        %898 = vmatprep.subr.mxu0 0.0
        %899 = vmatpush1.msra.mxu0 0.0
        %900 = vmatprep.subr.mxu0 0.0
        %901 = vmatpush1.msra.mxu0 0.0
        %902 = vmatprep.mubr.f32.mxu0 0.0
        %903 = vmatmul.mubr.f32.gmra.mrb[0].mxu0 %v219
        %v904 = vpop.f32.mrb[0].mxu0
        %v905 = vadd.f32 0.0, %v904
        %v906 = vpop.f32.mrb[0].mxu0
        %v907 = vadd.f32 0.0, %v906
        %908 = vdwg.mxu0
        %909 = vmatprep.subr.mxu0 %v260
        %910 = vmatpush1.msra.mxu0 %v258
        %911 = vmatprep.subr.mxu0 0.0
        %912 = vmatpush1.msra.mxu0 0.0
        %913 = vmatprep.subr.mxu0 0.0
        %914 = vmatpush1.msra.mxu0 0.0
        %915 = vmatprep.subr.mxu0 0.0
        %916 = vmatpush1.msra.mxu0 0.0
        %917 = vmatprep.subr.mxu0 0.0
        %918 = vmatpush1.msra.mxu0 0.0
        %919 = vmatprep.subr.mxu0 0.0
        %920 = vmatpush1.msra.mxu0 0.0
        %921 = vmatprep.subr.mxu0 0.0
        %922 = vmatpush1.msra.mxu0 0.0
        %923 = vmatprep.subr.mxu0 0.0
        %924 = vmatpush1.msra.mxu0 0.0
        %925 = vmatprep.subr.mxu0 0.0
        %926 = vmatpush1.msra.mxu0 0.0
        %927 = vmatprep.subr.mxu0 0.0
        %928 = vmatpush1.msra.mxu0 0.0
        %929 = vmatprep.subr.mxu0 0.0
        %930 = vmatpush1.msra.mxu0 0.0
        %931 = vmatprep.subr.mxu0 0.0
        %932 = vmatpush1.msra.mxu0 0.0
        %933 = vmatprep.subr.mxu0 0.0
        %934 = vmatpush1.msra.mxu0 0.0
        %935 = vmatprep.subr.mxu0 0.0
        %936 = vmatpush1.msra.mxu0 0.0
        %937 = vmatprep.subr.mxu0 0.0
        %938 = vmatpush1.msra.mxu0 0.0
        %939 = vmatprep.subr.mxu0 0.0
        %940 = vmatpush1.msra.mxu0 0.0
        %941 = vmatprep.subr.mxu0 0.0
        %942 = vmatpush1.msra.mxu0 0.0
        %943 = vmatprep.subr.mxu0 0.0
        %944 = vmatpush1.msra.mxu0 0.0
        %945 = vmatprep.subr.mxu0 0.0
        %946 = vmatpush1.msra.mxu0 0.0
        %947 = vmatprep.subr.mxu0 0.0
        %948 = vmatpush1.msra.mxu0 0.0
        %949 = vmatprep.subr.mxu0 0.0
        %950 = vmatpush1.msra.mxu0 0.0
        %951 = vmatprep.subr.mxu0 0.0
        %952 = vmatpush1.msra.mxu0 0.0
        %953 = vmatprep.subr.mxu0 0.0
        %954 = vmatpush1.msra.mxu0 0.0
        %955 = vmatprep.subr.mxu0 0.0
        %956 = vmatpush1.msra.mxu0 0.0
        %957 = vmatprep.subr.mxu0 0.0
        %958 = vmatpush1.msra.mxu0 0.0
        %959 = vmatprep.subr.mxu0 0.0
        %960 = vmatpush1.msra.mxu0 0.0
        %961 = vmatprep.subr.mxu0 0.0
        %962 = vmatpush1.msra.mxu0 0.0
        %963 = vmatprep.subr.mxu0 0.0
        %964 = vmatpush1.msra.mxu0 0.0
        %965 = vmatprep.subr.mxu0 0.0
        %966 = vmatpush1.msra.mxu0 0.0
        %967 = vmatprep.subr.mxu0 0.0
        %968 = vmatpush1.msra.mxu0 0.0
        %969 = vmatprep.subr.mxu0 0.0
        %970 = vmatpush1.msra.mxu0 0.0
        %971 = vmatprep.subr.mxu0 0.0
        %972 = vmatpush1.msra.mxu0 0.0
        %973 = vmatprep.mubr.f32.mxu0 0.0
        %974 = vmatmul.mubr.f32.gmra.mrb[0].mxu0 %v219
        %v975 = vpop.f32.mrb[0].mxu0
        %v976 = vadd.f32 0.0, %v975
        %v977 = vpop.f32.mrb[0].mxu0
        %v978 = vadd.f32 0.0, %v977
        %979 = vdwg.mxu0
        %980 = vmatprep.subr.mxu0 %v264
        %981 = vmatpush1.msra.mxu0 %v262
        %982 = vmatprep.subr.mxu0 0.0
        %983 = vmatpush1.msra.mxu0 0.0
        %984 = vmatprep.subr.mxu0 0.0
        %985 = vmatpush1.msra.mxu0 0.0
        %986 = vmatprep.subr.mxu0 0.0
        %987 = vmatpush1.msra.mxu0 0.0
        %988 = vmatprep.subr.mxu0 0.0
        %989 = vmatpush1.msra.mxu0 0.0
        %990 = vmatprep.subr.mxu0 0.0
        %991 = vmatpush1.msra.mxu0 0.0
        %992 = vmatprep.subr.mxu0 0.0
        %993 = vmatpush1.msra.mxu0 0.0
        %994 = vmatprep.subr.mxu0 0.0
        %995 = vmatpush1.msra.mxu0 0.0
        %996 = vmatprep.subr.mxu0 0.0
        %997 = vmatpush1.msra.mxu0 0.0
        %998 = vmatprep.subr.mxu0 0.0
        %999 = vmatpush1.msra.mxu0 0.0
        %1000 = vmatprep.subr.mxu0 0.0
        %1001 = vmatpush1.msra.mxu0 0.0
        %1002 = vmatprep.subr.mxu0 0.0
        %1003 = vmatpush1.msra.mxu0 0.0
        %1004 = vmatprep.subr.mxu0 0.0
        %1005 = vmatpush1.msra.mxu0 0.0
        %1006 = vmatprep.subr.mxu0 0.0
        %1007 = vmatpush1.msra.mxu0 0.0
        %1008 = vmatprep.subr.mxu0 0.0
        %1009 = vmatpush1.msra.mxu0 0.0
        %1010 = vmatprep.subr.mxu0 0.0
        %1011 = vmatpush1.msra.mxu0 0.0
        %1012 = vmatprep.subr.mxu0 0.0
        %1013 = vmatpush1.msra.mxu0 0.0
        %1014 = vmatprep.subr.mxu0 0.0
        %1015 = vmatpush1.msra.mxu0 0.0
        %1016 = vmatprep.subr.mxu0 0.0
        %1017 = vmatpush1.msra.mxu0 0.0
        %1018 = vmatprep.subr.mxu0 0.0
        %1019 = vmatpush1.msra.mxu0 0.0
        %1020 = vmatprep.subr.mxu0 0.0
        %1021 = vmatpush1.msra.mxu0 0.0
        %1022 = vmatprep.subr.mxu0 0.0
        %1023 = vmatpush1.msra.mxu0 0.0
        %1024 = vmatprep.subr.mxu0 0.0
        %1025 = vmatpush1.msra.mxu0 0.0
        %1026 = vmatprep.subr.mxu0 0.0
        %1027 = vmatpush1.msra.mxu0 0.0
        %1028 = vmatprep.subr.mxu0 0.0
        %1029 = vmatpush1.msra.mxu0 0.0
        %1030 = vmatprep.subr.mxu0 0.0
        %1031 = vmatpush1.msra.mxu0 0.0
        %1032 = vmatprep.subr.mxu0 0.0
        %1033 = vmatpush1.msra.mxu0 0.0
        %1034 = vmatprep.subr.mxu0 0.0
        %1035 = vmatpush1.msra.mxu0 0.0
        %1036 = vmatprep.subr.mxu0 0.0
        %1037 = vmatpush1.msra.mxu0 0.0
        %1038 = vmatprep.subr.mxu0 0.0
        %1039 = vmatpush1.msra.mxu0 0.0
        %1040 = vmatprep.subr.mxu0 0.0
        %1041 = vmatpush1.msra.mxu0 0.0
        %1042 = vmatprep.subr.mxu0 0.0
        %1043 = vmatpush1.msra.mxu0 0.0
        %1044 = vmatprep.mubr.f32.mxu0 0.0
        %1045 = vmatmul.mubr.f32.gmra.mrb[0].mxu0 %v219
        %v1046 = vpop.f32.mrb[0].mxu0
        %v1047 = vadd.f32 0.0, %v1046
        %v1048 = vpop.f32.mrb[0].mxu0
        %v1049 = vadd.f32 0.0, %v1048
        %1050 = vdwg.mxu0
        %1051 = vmatprep.subr.mxu0 %v268
        %1052 = vmatpush1.msra.mxu0 %v266
        %1053 = vmatprep.subr.mxu0 0.0
        %1054 = vmatpush1.msra.mxu0 0.0
        %1055 = vmatprep.subr.mxu0 0.0
        %1056 = vmatpush1.msra.mxu0 0.0
        %1057 = vmatprep.subr.mxu0 0.0
        %1058 = vmatpush1.msra.mxu0 0.0
        %1059 = vmatprep.subr.mxu0 0.0
        %1060 = vmatpush1.msra.mxu0 0.0
        %1061 = vmatprep.subr.mxu0 0.0
        %1062 = vmatpush1.msra.mxu0 0.0
        %1063 = vmatprep.subr.mxu0 0.0
        %1064 = vmatpush1.msra.mxu0 0.0
        %1065 = vmatprep.subr.mxu0 0.0
        %1066 = vmatpush1.msra.mxu0 0.0
        %1067 = vmatprep.subr.mxu0 0.0
        %1068 = vmatpush1.msra.mxu0 0.0
        %1069 = vmatprep.subr.mxu0 0.0
        %1070 = vmatpush1.msra.mxu0 0.0
        %1071 = vmatprep.subr.mxu0 0.0
        %1072 = vmatpush1.msra.mxu0 0.0
        %1073 = vmatprep.subr.mxu0 0.0
        %1074 = vmatpush1.msra.mxu0 0.0
        %1075 = vmatprep.subr.mxu0 0.0
        %1076 = vmatpush1.msra.mxu0 0.0
        %1077 = vmatprep.subr.mxu0 0.0
        %1078 = vmatpush1.msra.mxu0 0.0
        %1079 = vmatprep.subr.mxu0 0.0
        %1080 = vmatpush1.msra.mxu0 0.0
        %1081 = vmatprep.subr.mxu0 0.0
        %1082 = vmatpush1.msra.mxu0 0.0
        %1083 = vmatprep.subr.mxu0 0.0
        %1084 = vmatpush1.msra.mxu0 0.0
        %1085 = vmatprep.subr.mxu0 0.0
        %1086 = vmatpush1.msra.mxu0 0.0
        %1087 = vmatprep.subr.mxu0 0.0
        %1088 = vmatpush1.msra.mxu0 0.0
        %1089 = vmatprep.subr.mxu0 0.0
        %1090 = vmatpush1.msra.mxu0 0.0
        %1091 = vmatprep.subr.mxu0 0.0
        %1092 = vmatpush1.msra.mxu0 0.0
        %1093 = vmatprep.subr.mxu0 0.0
        %1094 = vmatpush1.msra.mxu0 0.0
        %1095 = vmatprep.subr.mxu0 0.0
        %1096 = vmatpush1.msra.mxu0 0.0
        %1097 = vmatprep.subr.mxu0 0.0
        %1098 = vmatpush1.msra.mxu0 0.0
        %1099 = vmatprep.subr.mxu0 0.0
        %1100 = vmatpush1.msra.mxu0 0.0
        %1101 = vmatprep.subr.mxu0 0.0
        %1102 = vmatpush1.msra.mxu0 0.0
        %1103 = vmatprep.subr.mxu0 0.0
        %1104 = vmatpush1.msra.mxu0 0.0
        %1105 = vmatprep.subr.mxu0 0.0
        %1106 = vmatpush1.msra.mxu0 0.0
        %1107 = vmatprep.subr.mxu0 0.0
        %1108 = vmatpush1.msra.mxu0 0.0
        %1109 = vmatprep.subr.mxu0 0.0
        %1110 = vmatpush1.msra.mxu0 0.0
        %1111 = vmatprep.subr.mxu0 0.0
        %1112 = vmatpush1.msra.mxu0 0.0
        %1113 = vmatprep.subr.mxu0 0.0
        %1114 = vmatpush1.msra.mxu0 0.0
        %1115 = vmatprep.mubr.f32.mxu0 0.0
        %1116 = vmatmul.mubr.f32.gmra.mrb[0].mxu0 %v219
        %v1117 = vpop.f32.mrb[0].mxu0
        %v1118 = vadd.f32 0.0, %v1117
        %v1119 = vpop.f32.mrb[0].mxu0
        %v1120 = vadd.f32 0.0, %v1119
        %1121 = vdwg.mxu0
        %1122 = vst [vmem:[%s177] sm:$0xff] %v337
        %1123 = vst [vmem:[%s177 + $0x8] sm:$0xff] %v339
        %1124 = vst [vmem:[%s177 + $0x10] sm:$0xff] %v408
        %1125 = vst [vmem:[%s177 + $0x18] sm:$0xff] %v410
        %1126 = vst [vmem:[%s177 + $0x20] sm:$0xff] %v479
        %1127 = vst [vmem:[%s177 + $0x28] sm:$0xff] %v481
        %1128 = vst [vmem:[%s177 + $0x30] sm:$0xff] %v550
        %1129 = vst [vmem:[%s177 + $0x38] sm:$0xff] %v552
        %1130 = vst [vmem:[%s177 + $0x40] sm:$0xff] %v621
        %1131 = vst [vmem:[%s177 + $0x48] sm:$0xff] %v623
        %1132 = vst [vmem:[%s177 + $0x50] sm:$0xff] %v692
        %1133 = vst [vmem:[%s177 + $0x58] sm:$0xff] %v694
        %1134 = vst [vmem:[%s177 + $0x60] sm:$0xff] %v763
        %1135 = vst [vmem:[%s177 + $0x68] sm:$0xff] %v765
        %1136 = vst [vmem:[%s177 + $0x70] sm:$0xff] %v834
        %1137 = vst [vmem:[%s177 + $0x78] sm:$0xff] %v836
        %1138 = vst [vmem:[%s177 + $0x80] sm:$0xff] %v905
        %1139 = vst [vmem:[%s177 + $0x88] sm:$0xff] %v907
        %1140 = vst [vmem:[%s177 + $0x90] sm:$0xff] %v976
        %1141 = vst [vmem:[%s177 + $0x98] sm:$0xff] %v978
        %1142 = vst [vmem:[%s177 + $0xa0] sm:$0xff] %v1047
        %1143 = vst [vmem:[%s177 + $0xa8] sm:$0xff] %v1049
        %1144 = vst [vmem:[%s177 + $0xb0] sm:$0xff] %v1118
        %1145 = vst [vmem:[%s177 + $0xb8] sm:$0xff] %v1120
        %s1146 = sand.u32 %s90, 1
        %s1147 = scalar_lea.sflag [#allocation4], %s1146
        %s1148 = sand.u32 %s90, 1
        %s1149 = smul.addr %s1148, 192
        %s1150 = scalar_lea.vmem [#allocation5], %s1149
        // Predicated region
        $region33: #{tpu_custom_call.1} parent=27 // pred_check
          %p1151 = pneg %p100
        $region34: #{tpu_custom_call.1} parent=27 // pred_check_branch
          %1153 = sbr.rel (%p1151) target = $region36
        $region35: #{tpu_custom_call.1} parent=27 // pred_region
          %s1154 = smul.u32 24, %s24
          %s1156 = ssub.s32 3072, 3072
          %1157 = vsyncadd %s1147, %s1156
          %s1158 = smul.addr %s23, 24
          %s1159 = sadd.s32 %s1154, %s1158
          %s1160 = smul.addr %s1159, 128
          %s1161 = scalar_lea.hbm %s2, %s1160
          %s1163 = sshll.u32 %s1150, 4
          %s1164 = int_to_ptr.vmem [resolvable:$true] %s1163
          %1166 = dma.vmem_to_hbm [thread:$0]  %s1164, 3072, %s1161, %s1147
        $region36: #{tpu_custom_call.1} parent=27 // pred_fallthru
          _
      $region28: #{tpu_custom_call.1} parent=5 // pred_fallthru
        _
      %p1167 = scmp.le.s32.totalorder 2, %s14
      // Predicated region
      $region37: #{tpu_custom_call.1} parent=5 // pred_check
        %p1168 = pneg %p1167
      $region38: #{tpu_custom_call.1} parent=5 // pred_check_branch
        %1170 = sbr.rel (%p1168) target = $region40
      $region39: #{tpu_custom_call.1} parent=5 // pred_region
        %s1171 = ssub.s32 %s14, 2
        // Predicated region
        $region41: #{tpu_custom_call.1} parent=39 // pred_check
          %p1172 = pneg %p106
        $region42: #{tpu_custom_call.1} parent=39 // pred_check_branch
          %1174 = sbr.rel (%p1172) target = $region44
        $region43: #{tpu_custom_call.1} parent=39 // pred_region
          %s1175 = sand.u32 %s91, 1
          %s1176 = scalar_lea.sflag [#allocation4], %s1175
          %s1177 = sand.u32 %s91, 1
          %s1178 = smul.addr %s1177, 192
          %s1179 = scalar_lea.vmem [#allocation5], %s1178
          %1180 = dma.done %s1176, 3072
        $region44: #{tpu_custom_call.1} parent=39 // pred_fallthru
          _
      $region40: #{tpu_custom_call.1} parent=5 // pred_fallthru
        _
    $region6: #{tpu_custom_call.1} parent=1 // loop_footer
      %s18 = sadd.s32 1, %s14
    $region7: #{tpu_custom_call.1} parent=1 // loop_footer_branch
      %13 = sbr.rel target = $region3
    $region8: #{tpu_custom_call.1} parent=1 // loop_exit
      _
    %1181 = vsyncpa [#allocation3], 1
    %s1182 = scalar_lea.sflag [#allocation3], 1
    %1183 = vsyncpa %s1182, 1
    %1184 = vsyncpa [#allocation4], 1
    %s1185 = scalar_lea.sflag [#allocation4], 1
    %1186 = vsyncpa %s1185, 1

</llo_original>
